<compile_context>
chip_gen: v6e
topology: v6e:2x2x1
jax: 0.10.0
libtpu: 0.0.40
codegen_flags: <defaults>
</compile_context>

<pallas_src>
import functools

import jax
import jax.numpy as jnp
import numpy as np
from jax.experimental import pallas as pl
from jax.experimental.pallas import tpu as pltpu


def _newton_recip(x):
    """EUP approx reciprocal refined with one Newton step (~1e-7 rel error)."""
    y = pl.reciprocal(x, approx=True)
    return y * (2.0 - x * y)


def _loss_keypoints_kernel(
    pred_ref,   # [V+1, n_kpts, R]  native dtype  VMEM  (channel-split predictions)
    tgt_ref,    # [1+V, n_kpts, R]  native dtype  VMEM  (channel-split targets)
    aux_ref,    # [n_aux, 1, R]     f32           VMEM  (packed nb/scale scalars)
    out_ref,    # [1, 1]            f32           SMEM  (scalar loss)
    *,
    nbr_variable,
    total_elems,
    cost_class,
    cost_distance,
    cost_OKS,
    scale_factor,
):
    V = nbr_variable
    f32 = jnp.float32

    # Channel slices are leading-dim indexes: full-width [n_kpts, R] tiles,
    # no 1-lane masked ops.  Upcast to f32 in-kernel (native dtype over HBM).
    tgt_cls = tgt_ref[0].astype(f32)                                 # [n_kpts, R]
    logits = pred_ref[V].astype(f32)                                 # [n_kpts, R]

    # L1 distance accumulated per coordinate: pure VPU adds of full tiles.
    distance = jnp.abs(pred_ref[0].astype(f32) - tgt_ref[1].astype(f32))
    for v in range(1, V):
        distance = distance + jnp.abs(
            pred_ref[v].astype(f32) - tgt_ref[v + 1].astype(f32))

    # filter_ = (target_class > 0); per-object keypoint count is a sublane
    # reduce, clamped at 1; one exact reciprocal on the tiny [1, R] row.
    filt = (tgt_cls > 0.0).astype(f32)                               # [n_kpts, R]
    sum_ = jnp.maximum(jnp.sum(filt, axis=0, keepdims=True), 1.0)    # [1, R]
    w = filt * pl.reciprocal(sum_, approx=False)                     # [n_kpts, R]

    nb_row = aux_ref[0]                                              # [1, R]
    inv_nb = _newton_recip(nb_row)                                   # [1, R]

    # Classification: BCEWithLogitsLoss (mean) against class targets clamped at 0.
    z = jnp.maximum(tgt_cls, 0.0)
    bce = (jnp.maximum(logits, 0.0) - logits * z
           + jnp.log1p(jnp.exp(-jnp.abs(logits))))

    # All loss terms folded into one per-element tile -> one full reduce.
    combined = (cost_distance * (distance * w * inv_nb)
                + (cost_class / total_elems) * bce)

    if cost_OKS > 0:
        s = aux_ref[1]                                               # [1, R]
        inv_s2 = _newton_recip(s * s * scale_factor)
        combined = combined - cost_OKS * (jnp.exp(-distance * inv_s2) * w)
        # aux row 2 holds nb_cars on the (o == 0) lane of each batch element and
        # zero elsewhere, so its lane sum is exactly sum(nb_cars).
        total = jnp.sum(combined) + cost_OKS * jnp.sum(aux_ref[2])
    else:
        total = jnp.sum(combined)

    out_ref[0, 0] = total


def loss_keypoints_pallas(
    predicted_keypoints,   # [bs, n_obj*n_kpts, V+1]  (or [bs, n_obj, n_kpts, V+1])
    targeted_keypoints,    # [bs, n_obj, n_kpts, 1+V]
    scale,                 # [bs, n_obj]
    nb_cars,               # [bs, 1] (or [bs])
    *,
    nbr_variable,
    scale_factor=1.0,
    cost_class=1.0,
    cost_distance=1.0,
    cost_OKS=1.0,
):
    bs, n_obj, n_kpts, chans = targeted_keypoints.shape
    V = int(nbr_variable)
    assert V >= 1 and chans == V + 1
    R = bs * n_obj

    # The flattened query axis of `predicted_keypoints` must be row-major
    # [n_obj, n_kpts] (keypoints of an object contiguous), matching the
    # reference `.view(bs, n_obj, n_kpts)` semantics.
    if predicted_keypoints.ndim == 3:
        assert predicted_keypoints.shape == (bs, n_obj * n_kpts, V + 1)
        pred4 = predicted_keypoints.reshape(bs, n_obj, n_kpts, V + 1)
    else:
        assert predicted_keypoints.shape == (bs, n_obj, n_kpts, V + 1)
        pred4 = predicted_keypoints

    # Lane-dense, channel-split layout (layout plumbing only, native dtype kept;
    # the f32 upcast happens inside the kernel):
    #   [C, n_kpts, bs*n_obj]  --  channels lead, keypoints on sublanes,
    #   flattened (batch, object) on lanes.
    pred_t = jnp.transpose(pred4, (3, 2, 0, 1)).reshape(V + 1, n_kpts, R)
    tgt_t = jnp.transpose(targeted_keypoints, (3, 2, 0, 1)).reshape(V + 1, n_kpts, R)

    compute_oks = float(cost_OKS) > 0.0

    # Tiny per-(batch, object) scalars packed into ONE aux array (one DMA):
    #   row 0: nb_cars broadcast per (b, o)        -> 1/nb weight for distance loss
    #   row 1: scale per (b, o)                    -> OKS only
    #   row 2: nb_cars at o == 0, zero elsewhere   -> lane-sum == sum(nb_cars), OKS only
    nb_flat = nb_cars.astype(jnp.float32).reshape(bs)
    rows = [jnp.broadcast_to(nb_flat[:, None], (bs, n_obj)).reshape(1, R)]
    if compute_oks:
        rows.append(scale.astype(jnp.float32).reshape(1, R))
        rows.append(
            jnp.concatenate(
                [nb_flat[:, None], jnp.zeros((bs, n_obj - 1), jnp.float32)], axis=1
            ).reshape(1, R)
        )
    aux = jnp.stack(rows, axis=0)   # [n_aux, 1, R] f32

    E = bs * n_obj * n_kpts
    ce = pl.CostEstimate(
        flops=E * (4 * V + 24),
        transcendentals=(3 if compute_oks else 2) * E,
        bytes_accessed=int(pred_t.dtype.itemsize) * pred_t.size
        + int(tgt_t.dtype.itemsize) * tgt_t.size
        + 4 * aux.size + 4,
    )

    kernel = functools.partial(
        _loss_keypoints_kernel,
        nbr_variable=V,
        total_elems=E,
        cost_class=float(cost_class),
        cost_distance=float(cost_distance),
        cost_OKS=float(cost_OKS),
        scale_factor=float(scale_factor),
    )

    vmem = pltpu.MemorySpace.VMEM
    smem = pltpu.MemorySpace.SMEM

    out = pl.pallas_call(
        kernel,
        out_shape=jax.ShapeDtypeStruct((1, 1), jnp.float32),
        in_specs=[
            pl.BlockSpec(memory_space=vmem),  # predicted keypoints [V+1, n_kpts, R]
            pl.BlockSpec(memory_space=vmem),  # targeted keypoints  [1+V, n_kpts, R]
            pl.BlockSpec(memory_space=vmem),  # packed aux scalars  [n_aux, 1, R]
        ],
        out_specs=pl.BlockSpec(memory_space=smem),
        cost_estimate=ce,
    )(pred_t, tgt_t, aux)
    return out[0, 0]


def loss_keypoints_ref(
    predicted_keypoints, targeted_keypoints, scale, nb_cars, *,
    nbr_variable, scale_factor=1.0, cost_class=1.0, cost_distance=1.0, cost_OKS=1.0,
):
    """Pure-JAX reference mirroring the PyTorch forward (use_matcher=False)."""
    bs, n_obj, n_kpts, _ = targeted_keypoints.shape
    V = nbr_variable
    pred = predicted_keypoints.astype(jnp.float32)
    tgt = targeted_keypoints.astype(jnp.float32)

    pred_pos = pred[:, :, :V]
    tgt_pos = tgt[..., 1:].reshape(bs, n_obj * n_kpts, V)
    distance = jnp.sum(jnp.abs(pred_pos - tgt_pos), axis=2).reshape(bs, n_obj, n_kpts)

    tgt_cls = tgt[..., 0]                                   # [bs, n_obj, n_kpts]
    filt = (tgt_cls > 0).astype(jnp.float32)
    sum_ = jnp.maximum(jnp.sum(filt, axis=2, keepdims=True), 1.0)
    nb_b = jnp.broadcast_to(
        nb_cars.astype(jnp.float32).reshape(bs, 1, 1), (bs, n_obj, n_kpts)
    )
    distance_loss = jnp.sum(distance * filt / sum_ / nb_b)

    oks_loss = 0.0
    if cost_OKS > 0:
        oks_loss = jnp.sum(nb_cars.astype(jnp.float32)) - jnp.sum(
            jnp.exp(-distance / (scale[:, :, None] ** 2 * scale_factor)) * filt / sum_
        )

    z = jnp.maximum(tgt_cls.reshape(bs, n_obj * n_kpts), 0.0)
    x = pred[:, :, V]
    bce = jnp.maximum(x, 0.0) - x * z + jnp.log1p(jnp.exp(-jnp.abs(x)))
    classification_loss = jnp.mean(bce)

    return (cost_distance * distance_loss + cost_OKS * oks_loss
            + cost_class * classification_loss)


if __name__ == "__main__":
    # Small deterministic example shapes.
    bs, n_obj, n_kpts, V = 2, 4, 8, 2
    N = n_obj * n_kpts

    key = jax.random.PRNGKey(0)
    k1, k2, k3, k4, k5 = jax.random.split(key, 5)

    predicted_keypoints = jax.random.normal(k1, (bs, N, V + 1), dtype=jnp.float32)
    tgt_pos = jax.random.normal(k2, (bs, n_obj, n_kpts, V), dtype=jnp.float32)
    tgt_cls = jax.random.randint(k3, (bs, n_obj, n_kpts), -1, 2).astype(jnp.float32)
    targeted_keypoints = jnp.concatenate([tgt_cls[..., None], tgt_pos], axis=-1)
    scale = jax.random.uniform(k4, (bs, n_obj), minval=0.5, maxval=2.0,
                               dtype=jnp.float32)
    nb_cars = jax.random.randint(k5, (bs, 1), 1, 4).astype(jnp.float32)

    for hparams in (
        dict(nbr_variable=V, scale_factor=1.0, cost_class=1.0,
             cost_distance=1.0, cost_OKS=1.0),
        # Exercises the static no-OKS path (scale not passed to the kernel).
        dict(nbr_variable=V, scale_factor=1.0, cost_class=1.0,
             cost_distance=1.0, cost_OKS=0.0),
    ):
        out = loss_keypoints_pallas(
            predicted_keypoints, targeted_keypoints, scale, nb_cars, **hparams
        )
        out = jax.block_until_ready(out)
        ref = loss_keypoints_ref(
            predicted_keypoints, targeted_keypoints, scale, nb_cars, **hparams
        )
        np.testing.assert_allclose(np.asarray(out), np.asarray(ref),
                                   rtol=1e-5, atol=1e-5)

    print("KERNEL_OK")
</pallas_src>

<mosaic_0001>
module attributes {stable_mosaic.version = 11 : i64} {
  func.func @_loss_keypoints_kernel(%arg0: memref<3x8x8xf32, #tpu.memory_space<vmem>>, %arg1: memref<3x8x8xf32, #tpu.memory_space<vmem>>, %arg2: memref<3x1x8xf32, #tpu.memory_space<vmem>>, %arg3: memref<1x1xf32, #tpu.memory_space<smem>>) attributes {dimension_semantics = [], scalar_prefetch = 0 : i64, scratch_operands = 0 : i64, tpu.core_type = #tpu.core_type<tc>} {
    %c0 = arith.constant 0 : index
    %c0_0 = arith.constant 0 : index
    %c0_1 = arith.constant 0 : index
    %0 = vector.load %arg1[%c0, %c0_0, %c0_1] : memref<3x8x8xf32, #tpu.memory_space<vmem>>, vector<1x8x8xf32>
    %1 = vector.shape_cast %0 : vector<1x8x8xf32> to vector<8x8xf32>
    %c2 = arith.constant 2 : index
    %c0_2 = arith.constant 0 : index
    %c0_3 = arith.constant 0 : index
    %2 = vector.load %arg0[%c2, %c0_2, %c0_3] : memref<3x8x8xf32, #tpu.memory_space<vmem>>, vector<1x8x8xf32>
    %3 = vector.shape_cast %2 : vector<1x8x8xf32> to vector<8x8xf32>
    %c0_4 = arith.constant 0 : index
    %c0_5 = arith.constant 0 : index
    %c0_6 = arith.constant 0 : index
    %4 = vector.load %arg0[%c0_4, %c0_5, %c0_6] : memref<3x8x8xf32, #tpu.memory_space<vmem>>, vector<1x8x8xf32>
    %5 = vector.shape_cast %4 : vector<1x8x8xf32> to vector<8x8xf32>
    %c1 = arith.constant 1 : index
    %c0_7 = arith.constant 0 : index
    %c0_8 = arith.constant 0 : index
    %6 = vector.load %arg1[%c1, %c0_7, %c0_8] : memref<3x8x8xf32, #tpu.memory_space<vmem>>, vector<1x8x8xf32>
    %7 = vector.shape_cast %6 : vector<1x8x8xf32> to vector<8x8xf32>
    %8 = arith.subf %5, %7 : vector<8x8xf32>
    %9 = math.absf %8 : vector<8x8xf32>
    %c1_9 = arith.constant 1 : index
    %c0_10 = arith.constant 0 : index
    %c0_11 = arith.constant 0 : index
    %10 = vector.load %arg0[%c1_9, %c0_10, %c0_11] : memref<3x8x8xf32, #tpu.memory_space<vmem>>, vector<1x8x8xf32>
    %11 = vector.shape_cast %10 : vector<1x8x8xf32> to vector<8x8xf32>
    %c2_12 = arith.constant 2 : index
    %c0_13 = arith.constant 0 : index
    %c0_14 = arith.constant 0 : index
    %12 = vector.load %arg1[%c2_12, %c0_13, %c0_14] : memref<3x8x8xf32, #tpu.memory_space<vmem>>, vector<1x8x8xf32>
    %13 = vector.shape_cast %12 : vector<1x8x8xf32> to vector<8x8xf32>
    %14 = arith.subf %11, %13 : vector<8x8xf32>
    %15 = math.absf %14 : vector<8x8xf32>
    %16 = arith.addf %9, %15 : vector<8x8xf32>
    %cst = arith.constant 0.000000e+00 : f32
    %17 = vector.broadcast %cst : f32 to vector<8x8xf32>
    %18 = arith.cmpf ogt, %1, %17 : vector<8x8xf32>
    %19 = arith.extui %18 : vector<8x8xi1> to vector<8x8xi32>
    %20 = arith.sitofp %19 : vector<8x8xi32> to vector<8x8xf32>
    %cst_15 = arith.constant dense<0.000000e+00> : vector<8xf32>
    %21 = vector.multi_reduction <add>, %20, %cst_15 [0] : vector<8x8xf32> to vector<8xf32>
    %22 = vector.shape_cast %21 : vector<8xf32> to vector<1x8xf32>
    %cst_16 = arith.constant 1.000000e+00 : f32
    %23 = vector.broadcast %cst_16 : f32 to vector<1x8xf32>
    %24 = arith.maximumf %22, %23 : vector<1x8xf32>
    %25 = tpu.reciprocal %24 : vector<1x8xf32> -> vector<1x8xf32>
    %26 = vector.broadcast %25 : vector<1x8xf32> to vector<8x8xf32>
    %27 = arith.mulf %20, %26 : vector<8x8xf32>
    %c0_17 = arith.constant 0 : index
    %c0_18 = arith.constant 0 : index
    %c0_19 = arith.constant 0 : index
    %28 = vector.load %arg2[%c0_17, %c0_18, %c0_19] : memref<3x1x8xf32, #tpu.memory_space<vmem>>, vector<1x1x8xf32>
    %29 = vector.shape_cast %28 : vector<1x1x8xf32> to vector<1x8xf32>
    %30 = tpu.reciprocal %29 {approx = true} : vector<1x8xf32> -> vector<1x8xf32>
    %31 = arith.mulf %29, %30 : vector<1x8xf32>
    %cst_20 = arith.constant 2.000000e+00 : f32
    %32 = vector.broadcast %cst_20 : f32 to vector<1x8xf32>
    %33 = arith.subf %32, %31 : vector<1x8xf32>
    %34 = arith.mulf %30, %33 : vector<1x8xf32>
    %cst_21 = arith.constant 0.000000e+00 : f32
    %35 = vector.broadcast %cst_21 : f32 to vector<8x8xf32>
    %36 = arith.maximumf %1, %35 : vector<8x8xf32>
    %cst_22 = arith.constant 0.000000e+00 : f32
    %37 = vector.broadcast %cst_22 : f32 to vector<8x8xf32>
    %38 = arith.maximumf %3, %37 : vector<8x8xf32>
    %39 = arith.mulf %3, %36 : vector<8x8xf32>
    %40 = arith.subf %38, %39 : vector<8x8xf32>
    %41 = math.absf %3 : vector<8x8xf32>
    %cst_23 = arith.constant 0.000000e+00 : f32
    %42 = vector.broadcast %cst_23 : f32 to vector<8x8xf32>
    %43 = arith.subf %42, %41 : vector<8x8xf32>
    %44 = math.exp %43 : vector<8x8xf32>
    %45 = math.log1p %44 : vector<8x8xf32>
    %46 = arith.addf %40, %45 : vector<8x8xf32>
    %47 = arith.mulf %16, %27 : vector<8x8xf32>
    %48 = vector.broadcast %34 : vector<1x8xf32> to vector<8x8xf32>
    %49 = arith.mulf %47, %48 : vector<8x8xf32>
    %cst_24 = arith.constant 1.000000e+00 : f32
    %50 = vector.broadcast %cst_24 : f32 to vector<8x8xf32>
    %51 = arith.mulf %50, %49 : vector<8x8xf32>
    %cst_25 = arith.constant 1.562500e-02 : f32
    %52 = vector.broadcast %cst_25 : f32 to vector<8x8xf32>
    %53 = arith.mulf %52, %46 : vector<8x8xf32>
    %54 = arith.addf %51, %53 : vector<8x8xf32>
    %c1_26 = arith.constant 1 : index
    %c0_27 = arith.constant 0 : index
    %c0_28 = arith.constant 0 : index
    %55 = vector.load %arg2[%c1_26, %c0_27, %c0_28] : memref<3x1x8xf32, #tpu.memory_space<vmem>>, vector<1x1x8xf32>
    %56 = vector.shape_cast %55 : vector<1x1x8xf32> to vector<1x8xf32>
    %57 = arith.mulf %56, %56 : vector<1x8xf32>
    %cst_29 = arith.constant 1.000000e+00 : f32
    %58 = vector.broadcast %cst_29 : f32 to vector<1x8xf32>
    %59 = arith.mulf %57, %58 : vector<1x8xf32>
    %60 = tpu.reciprocal %59 {approx = true} : vector<1x8xf32> -> vector<1x8xf32>
    %61 = arith.mulf %59, %60 : vector<1x8xf32>
    %cst_30 = arith.constant 2.000000e+00 : f32
    %62 = vector.broadcast %cst_30 : f32 to vector<1x8xf32>
    %63 = arith.subf %62, %61 : vector<1x8xf32>
    %64 = arith.mulf %60, %63 : vector<1x8xf32>
    %cst_31 = arith.constant 0.000000e+00 : f32
    %65 = vector.broadcast %cst_31 : f32 to vector<8x8xf32>
    %66 = arith.subf %65, %16 : vector<8x8xf32>
    %67 = vector.broadcast %64 : vector<1x8xf32> to vector<8x8xf32>
    %68 = arith.mulf %66, %67 : vector<8x8xf32>
    %69 = math.exp %68 : vector<8x8xf32>
    %70 = arith.mulf %69, %27 : vector<8x8xf32>
    %cst_32 = arith.constant 1.000000e+00 : f32
    %71 = vector.broadcast %cst_32 : f32 to vector<8x8xf32>
    %72 = arith.mulf %71, %70 : vector<8x8xf32>
    %73 = arith.subf %54, %72 : vector<8x8xf32>
    %74 = vector.shape_cast %73 : vector<8x8xf32> to vector<1x8x8xf32>
    %cst_33 = arith.constant dense<0.000000e+00> : vector<1xf32>
    %75 = vector.multi_reduction <add>, %74, %cst_33 [1, 2] : vector<1x8x8xf32> to vector<1xf32>
    %76 = vector.shape_cast %75 : vector<1xf32> to vector<1x1x1xf32>
    %77 = vector.extract %76[0, 0, 0] : f32 from vector<1x1x1xf32>
    %c2_34 = arith.constant 2 : index
    %c0_35 = arith.constant 0 : index
    %c0_36 = arith.constant 0 : index
    %78 = vector.load %arg2[%c2_34, %c0_35, %c0_36] : memref<3x1x8xf32, #tpu.memory_space<vmem>>, vector<1x1x8xf32>
    %79 = vector.shape_cast %78 : vector<1x1x8xf32> to vector<1x8xf32>
    %80 = vector.shape_cast %79 : vector<1x8xf32> to vector<1x1x8xf32>
    %cst_37 = arith.constant dense<0.000000e+00> : vector<1xf32>
    %81 = vector.multi_reduction <add>, %80, %cst_37 [1, 2] : vector<1x1x8xf32> to vector<1xf32>
    %82 = vector.shape_cast %81 : vector<1xf32> to vector<1x1x1xf32>
    %83 = vector.extract %82[0, 0, 0] : f32 from vector<1x1x1xf32>
    %cst_38 = arith.constant 1.000000e+00 : f32
    %84 = arith.mulf %cst_38, %83 : f32
    %85 = arith.addf %77, %84 : f32
    %c0_39 = arith.constant 0 : index
    %c0_40 = arith.constant 0 : index
    %86 = memref.load %arg3[%c0_39, %c0_40] : memref<1x1xf32, #tpu.memory_space<smem>>
    memref.store %85, %arg3[%c0_39, %c0_40] : memref<1x1xf32, #tpu.memory_space<smem>>
    return
  }
}

</mosaic_0001>

<llo_original>
// kernel: tpu_custom_call.1
$region0: #{tpu_custom_call.1}
  #allocation0 [shape = 'u32[]', space=smem, size = 0x4, offset = 0x4, fixed_abs, tag = 'smem constant byte address 0x4 - core index']
  #allocation1 [shape = 'u32[144,128]{1,0:T(1,128)}', space=vmem, size = 0x12000, scoped, tag = 'internal scratch']
  %s0 = inlined_call_operand.hbm [shape: f32[3,8,8], index: 0, kind: input, shape index: {}]
  %s1 = inlined_call_operand.hbm [shape: f32[3,8,8], index: 1, kind: input, shape index: {}]
  %s2 = inlined_call_operand.vmem [shape: f32[3,1,8], index: 2, kind: input, shape index: {}]
  %s3 = inlined_call_operand.hbm [shape: f32[1,1], index: 3, kind: output, shape index: {}]
  %s4 = sld [smem:[#allocation0]]
  $region30: #{tpu_custom_call.1} parent=0
    _
  %s6 = ssub.s32 1, %s4
  %s7 = scalar_select 0, %s6, %s4
  $region1: #{tpu_custom_call.1} parent=0
    #allocation2 [shape = 'u8[12288]{0}', space=vmem, size = 0x3000, scoped, tag = 'input window, operand 0, single buffered']
    #allocation3 [shape = 's32[1]{0}', space=sflag, size = 0x4, scoped, tag = 'scoped memory for tpu_custom_call.1']
    #allocation4 [shape = 's32[1]{0}', space=sflag, size = 0x4, scoped, tag = 'scoped memory for tpu_custom_call.1']
    #allocation5 [shape = 'u8[12288]{0}', space=vmem, size = 0x3000, scoped, tag = 'input window, operand 1, single buffered']
    #allocation6 [shape = 's32[1]{0}', space=sflag, size = 0x4, scoped, tag = 'scoped memory for tpu_custom_call.1']
    #allocation7 [shape = 'u8[512]{0}', space=smem, size = 0x200, scoped, tag = 'output window, operand 0, single buffered']
    %8 = vsyncpa [#allocation3], 0
    %9 = vsyncpa [#allocation6], 0
    %10 = vsyncpa [#allocation4], 0
    // Predicated region
    $region2: #{tpu_custom_call.1} parent=1 // pred_check
      _
    $region3: #{tpu_custom_call.1} parent=1 // pred_check_branch
      %12 = sbr.rel (0) target = $region5
    $region4: #{tpu_custom_call.1} parent=1 // pred_region
      %s14 = ssub.s32 384, 384
      %15 = vsyncadd [#allocation3], %s14
      %s16 = sshll.u32 [#allocation2], 4
      %s17 = int_to_ptr.vmem [resolvable:$true] %s16
      %22 = dma.hbm_to_vmem [thread:$0]  %s0, 384, %s17, [#allocation3], 128, 128, 8
    $region5: #{tpu_custom_call.1} parent=1 // pred_fallthru
      _
    // Predicated region
    $region6: #{tpu_custom_call.1} parent=1 // pred_check
      _
    $region7: #{tpu_custom_call.1} parent=1 // pred_check_branch
      %24 = sbr.rel (0) target = $region9
    $region8: #{tpu_custom_call.1} parent=1 // pred_region
      %s26 = ssub.s32 384, 384
      %27 = vsyncadd [#allocation6], %s26
      %s28 = sshll.u32 [#allocation5], 4
      %s29 = int_to_ptr.vmem [resolvable:$true] %s28
      %34 = dma.hbm_to_vmem [thread:$0]  %s1, 384, %s29, [#allocation6], 128, 128, 8
    $region9: #{tpu_custom_call.1} parent=1 // pred_fallthru
      _
    // Predicated region
    $region10: #{tpu_custom_call.1} parent=1 // pred_check
      _
    $region11: #{tpu_custom_call.1} parent=1 // pred_check_branch
      %36 = sbr.rel (0) target = $region13
    $region12: #{tpu_custom_call.1} parent=1 // pred_region
      _
    $region13: #{tpu_custom_call.1} parent=1 // pred_fallthru
      _
    // Predicated region
    $region14: #{tpu_custom_call.1} parent=1 // pred_check
      _
    $region15: #{tpu_custom_call.1} parent=1 // pred_check_branch
      %38 = sbr.rel (0) target = $region17
    $region16: #{tpu_custom_call.1} parent=1 // pred_region
      %39 = dma.done [#allocation3], 384
    $region17: #{tpu_custom_call.1} parent=1 // pred_fallthru
      _
    // Predicated region
    $region18: #{tpu_custom_call.1} parent=1 // pred_check
      _
    $region19: #{tpu_custom_call.1} parent=1 // pred_check_branch
      %41 = sbr.rel (0) target = $region21
    $region20: #{tpu_custom_call.1} parent=1 // pred_region
      %42 = dma.done [#allocation6], 384
    $region21: #{tpu_custom_call.1} parent=1 // pred_fallthru
      _
    %v43 = vld [vmem:[#allocation5] sm:$0xff]
    %s44 = scalar_lea.vmem [#allocation2], 16
    %v45 = vld [vmem:[%s44] sm:$0xff]
    %v46 = vld [vmem:[#allocation2] sm:$0xff]
    %s47 = scalar_lea.vmem [#allocation5], 8
    %v48 = vld [vmem:[%s47] sm:$0xff]
    %v49 = vsub.f32 %v46, %v48
    %v50 = vand.u32 2147483647, %v49
    %s51 = scalar_lea.vmem [#allocation2], 8
    %v52 = vld [vmem:[%s51] sm:$0xff]
    %s53 = scalar_lea.vmem [#allocation5], 16
    %v54 = vld [vmem:[%s53] sm:$0xff]
    %v55 = vsub.f32 %v52, %v54
    %v56 = vand.u32 2147483647, %v55
    %v57 = vadd.f32 %v50, %v56
    %vm58 = vcmp.gt.f32.partialorder %v43, 0.0
    %v59 = vsel %vm58, 1, 0
    %v60 = vcvt.s32.f32 %v59
    %vm61 = vcmask 64512
    %v62 = vsel %vm61, %v60, 0.0
    %v63 = vrot.slane %v62, 4
    %v64 = vadd.f32 %v62, %v63
    %v65 = vrot.slane %v64, 2
    %v66 = vadd.f32 %v64, %v65
    %v67 = vrot.slane %v66, 1
    %v68 = vadd.f32 %v66, %v67
    %v69 = vmax.f32 %v68, 1.0
    %v70 = vrcp.pop %v69
    %v71 = vmul.f32 %v60, %v70
    %v72 = vld [vmem:[%s2] sm:$0x1]
    %v73 = vrcp.pop %v72
    %v74 = vmul.f32 %v72, %v73
    %v75 = vsub.f32 2.0, %v74
    %v76 = vmul.f32 %v73, %v75
    %v77 = vmax.f32 %v43, 0.0
    %v78 = vmax.f32 %v45, 0.0
    %v79 = vmul.f32 %v45, %v77
    %v80 = vsub.f32 %v78, %v79
    %v81 = vand.u32 2147483647, %v45
    %v82 = vsub.f32 0.0, %v81
    %v83 = vmul.f32 %v82, 1.442695
    %v84 = vpow.pop %v83
    %v85 = vadd.f32 %v84, 1.0
    %v86 = vlog2.pop %v85
    %v87 = vmul.f32 %v86, 0.6931472
    %v88 = vmul.f32 -0.5, %v84
    %v89 = vadd.f32 %v88, 1.0
    %v90 = vmul.f32 %v89, %v84
    %v91 = vand.u32 2147483647, %v84
    %vm92 = vcmp.lt.f32.partialorder %v91, 0.0004427343
    %v93 = vsel %vm92, %v90, %v87
    %v94 = vadd.f32 %v80, %v93
    %v95 = vmul.f32 %v57, %v71
    %v97 = vlaneseq
    %v98 = vshrl.u32 %v97, 7
    %v99 = vsub.s32 0, %v98
    %v100 = vrot.slane %v76, %v99
    %v102 = vmul.f32 %v95, %v100
    %v103 = vmul.f32 %v94, 0.015625
    %v104 = vadd.f32 %v102, %v103
    %s105 = scalar_lea.vmem %s2, 1
    %v106 = vld [vmem:[%s105] sm:$0x1]
    %v107 = vmul.f32 %v106, %v106
    %v108 = vrcp.pop %v107
    %v109 = vmul.f32 %v107, %v108
    %v110 = vsub.f32 2.0, %v109
    %v111 = vmul.f32 %v108, %v110
    %v112 = vsub.f32 0.0, %v57
    %v114 = vlaneseq
    %v115 = vshrl.u32 %v114, 7
    %v116 = vsub.s32 0, %v115
    %v117 = vrot.slane %v111, %v116
    %v119 = vmul.f32 %v112, %v117
    %v120 = vmul.f32 %v119, 1.442695
    %v121 = vpow.pop %v120
    %v122 = vmul.f32 %v121, %v71
    %v123 = vsub.f32 %v104, %v122
    %v124 = vsel %vm61, %v123, 0.0
    %125 = vadd.xlane.f32.xlu0 %v124
    %v126 = vpop.xlane.xlu0 %125
    %v127 = vrot.slane %v126, 4
    %v128 = vadd.f32 %v126, %v127
    %v129 = vrot.slane %v128, 2
    %v130 = vadd.f32 %v128, %v129
    %v131 = vrot.slane %v130, 1
    %v132 = vadd.f32 %v130, %v131
    %s133 = vtos %v132
    %s134 = scalar_lea.vmem %s2, 2
    %v135 = vld [vmem:[%s134] sm:$0x1]
    %vm136 = vcmask 57344
    %v137 = vsel %vm136, %v135, 0.0
    %138 = vadd.xlane.f32.xlu0 %v137
    %v139 = vpop.xlane.xlu0 %138
    %v140 = vrot.slane %v139, 4
    %v141 = vadd.f32 %v139, %v140
    %v142 = vrot.slane %v141, 2
    %v143 = vadd.f32 %v141, %v142
    %v144 = vrot.slane %v143, 1
    %v145 = vadd.f32 %v143, %v144
    %s146 = vtos %v145
    %s147 = sadd.f32 %s133, %s146
    %s148 = scalar_lea.smem [#allocation7], 0
    %149 = sst [smem:[%s148]] %s147
    // Predicated region
    $region22: #{tpu_custom_call.1} parent=1 // pred_check
      _
    $region23: #{tpu_custom_call.1} parent=1 // pred_check_branch
      %151 = sbr.rel (0) target = $region25
    $region24: #{tpu_custom_call.1} parent=1 // pred_region
      %s153 = ssub.s32 16, 16
      %154 = vsyncadd [#allocation4], %s153
      %157 = dma.smem_to_hbm [#allocation7], 16, %s3, [#allocation4]
    $region25: #{tpu_custom_call.1} parent=1 // pred_fallthru
      _
    // Predicated region
    $region26: #{tpu_custom_call.1} parent=1 // pred_check
      _
    $region27: #{tpu_custom_call.1} parent=1 // pred_check_branch
      %159 = sbr.rel (0) target = $region29
    $region28: #{tpu_custom_call.1} parent=1 // pred_region
      %160 = dma.done [#allocation4], 16
    $region29: #{tpu_custom_call.1} parent=1 // pred_fallthru
      _
    %161 = sfence
    %162 = vsyncpa [#allocation3], 1
    %163 = vsyncpa [#allocation6], 1
    %164 = vsyncpa [#allocation4], 1

</llo_original>
